<compile_context>
chip_gen: v7x
topology: tpu7x:2x2x1
jax: 0.10.0
libtpu: 0.0.40
codegen_flags: <defaults>
</compile_context>

<pallas_src>
import functools

import jax
import jax.numpy as jnp
from jax.experimental import pallas as pl
from jax.experimental.pallas import tpu as pltpu


# ----------------------------------------------------------------------------
# Fused kernel: merged block-diagonal LSTM recurrence + final linear,
# single invocation, everything resident in VMEM.
# ----------------------------------------------------------------------------
def _fused_kernel(Bp, T, T1, T2, H,
                  x_ref, w_ih_ref, w_hh_ref, b_ref, w_fc_ref, b_fc_ref,
                  out_ref):
    G = 2 * H                                            # merged per-gate width
    w_hh = w_hh_ref[...]                                 # (2H, 8H) block-diag

    # Hoisted input projection for BOTH streams: one big MXU matmul + bias.
    xproj = (
        jnp.dot(x_ref[...], w_ih_ref[...], preferred_element_type=jnp.float32)
        + b_ref[...]
    )                                                    # (T*Bp, 8H)

    h = jnp.zeros((Bp, G), jnp.float32)                  # [h1 | h2] lane-concat
    c = jnp.zeros((Bp, G), jnp.float32)

    if T1 != T2:
        lane = jax.lax.broadcasted_iota(jnp.int32, (Bp, G), 1)

    # TODO(synk): if T grows beyond ~32-64, switch to lax.fori_loop with a
    # small unroll and re-read xproj from VMEM per step to bound live ranges.
    for t in range(T):
        gates = xproj[t * Bp:(t + 1) * Bp, :] + jnp.dot(
            h, w_hh, preferred_element_type=jnp.float32)  # (Bp, 8H)

        # Single EUP pass over the full gate slab.  The g-gate columns were
        # pre-scaled by 2 at init time, so tanh(x) = 2*sigmoid(2x) - 1.
        s = jax.nn.sigmoid(gates)
        i_g = s[:, 0 * G:1 * G]
        f_g = s[:, 1 * G:2 * G]
        g_g = 2.0 * s[:, 2 * G:3 * G] - 1.0
        o_g = s[:, 3 * G:4 * G]

        c_new = f_g * c + i_g * g_g
        h_new = o_g * jnp.tanh(c_new)

        if t < T1 and t < T2:            # common case (SEQ1 == SEQ2): no mask
            h, c = h_new, c_new
        elif t < T1:                     # LSTM2 finished: freeze lanes [H, 2H)
            active = lane < H
            h = jnp.where(active, h_new, h)
            c = jnp.where(active, c_new, c)
        else:                            # LSTM1 finished: freeze lanes [0, H)
            active = lane >= H
            h = jnp.where(active, h_new, h)
            c = jnp.where(active, c_new, c)

    # h already holds concat(h1_last, h2_last) along lanes -> single fc matmul.
    out = (jnp.dot(h, w_fc_ref[...], preferred_element_type=jnp.float32)
           + b_fc_ref[...])
    out_ref[...] = out.astype(out_ref.dtype)


# ----------------------------------------------------------------------------
# Wrapper: tiny XLA-side prep (time-major, pad batch to 8 rows, lane-concat
# the two streams), then one grid-less pallas_call.
# ----------------------------------------------------------------------------
def lstm_module_forward(params, inpt1, inpt2):
    B, T1, I = inpt1.shape
    B2, T2, I2 = inpt2.shape
    assert B == B2 and I == I2
    T = max(T1, T2)
    H = params["w_hh_cat"].shape[0] // 2
    O = params["b_fc"].shape[1]
    Bp = max(8, ((B + 7) // 8) * 8)      # pad batch to a full sublane group

    def prep(x):
        b, t, i = x.shape
        x = jnp.transpose(x, (1, 0, 2))                       # (t, B, I)
        return jnp.pad(x, ((0, T - t), (0, Bp - b), (0, 0)))  # (T, Bp, I)

    x_cat = jnp.concatenate([prep(inpt1), prep(inpt2)], axis=-1)  # (T, Bp, 2I)
    x_cat = x_cat.reshape(T * Bp, 2 * I)

    vmem = pltpu.MemorySpace.VMEM
    out = pl.pallas_call(
        functools.partial(_fused_kernel, Bp, T, T1, T2, H),
        out_shape=jax.ShapeDtypeStruct((Bp, O), jnp.float32),
        in_specs=[pl.BlockSpec(memory_space=vmem)] * 6,
        out_specs=pl.BlockSpec(memory_space=vmem),
    )(x_cat, params["w_ih_cat"], params["w_hh_cat"], params["b_cat"],
      params["w_fc_t"], params["b_fc"])
    return out[:B]


# ----------------------------------------------------------------------------
# Pure-JAX reference (mirrors torch.nn.LSTM semantics) for a sanity check.
# ----------------------------------------------------------------------------
def _lstm_ref(x, w_ih_t, w_hh_t, b):
    B, T, I = x.shape
    H = w_hh_t.shape[0]

    def step(carry, x_t):
        h, c = carry
        gates = x_t @ w_ih_t + h @ w_hh_t + b[0]
        i = jax.nn.sigmoid(gates[:, 0 * H:1 * H])
        f = jax.nn.sigmoid(gates[:, 1 * H:2 * H])
        g = jnp.tanh(gates[:, 2 * H:3 * H])
        o = jax.nn.sigmoid(gates[:, 3 * H:4 * H])
        c = f * c + i * g
        h = o * jnp.tanh(c)
        return (h, c), None

    init = (jnp.zeros((B, H), jnp.float32), jnp.zeros((B, H), jnp.float32))
    (h, _), _ = jax.lax.scan(step, init, jnp.transpose(x, (1, 0, 2)))
    return h


def _forward_ref(params, inpt1, inpt2):
    h1 = _lstm_ref(inpt1, params["w_ih1_t"], params["w_hh1_t"], params["b1"])
    h2 = _lstm_ref(inpt2, params["w_ih2_t"], params["w_hh2_t"], params["b2"])
    feat = jnp.concatenate([h1, h2], axis=1)
    return feat @ params["w_fc_t"] + params["b_fc"][0]


# ----------------------------------------------------------------------------
# Deterministic parameter init (PyTorch-style uniform ±1/sqrt(hidden_size)).
# All kernel-side weight restructuring is done HERE, once.
# ----------------------------------------------------------------------------
def init_params(key, input_size, hidden_size, output_size):
    ks = jax.random.split(key, 12)
    H, I = hidden_size, input_size
    bound = 1.0 / jnp.sqrt(hidden_size)

    def u(k, shape):
        return jax.random.uniform(k, shape, jnp.float32, -bound, bound)

    # PyTorch layout: weight_ih (4H, I), weight_hh (4H, H), biases (4H,)
    w_ih1 = u(ks[0], (4 * H, I))
    w_hh1 = u(ks[1], (4 * H, H))
    b_ih1 = u(ks[2], (4 * H,))
    b_hh1 = u(ks[3], (4 * H,))
    w_ih2 = u(ks[4], (4 * H, I))
    w_hh2 = u(ks[5], (4 * H, H))
    b_ih2 = u(ks[6], (4 * H,))
    b_hh2 = u(ks[7], (4 * H,))
    # fc: weight (O, 2H), bias (O,)
    fc_bound = 1.0 / jnp.sqrt(2 * H)
    w_fc = jax.random.uniform(ks[8], (output_size, 2 * H),
                              jnp.float32, -fc_bound, fc_bound)
    b_fc = jax.random.uniform(ks[9], (output_size,),
                              jnp.float32, -fc_bound, fc_bound)

    # ---- merged (block-diagonal / lane-stacked) weights for the kernel ----
    def gate_blocks(w_t):  # w_t: (rows, 4H) -> four (rows, H) gate blocks i,f,g,o
        return [w_t[:, k * H:(k + 1) * H] for k in range(4)]

    w_ih1_t, w_ih2_t = w_ih1.T, w_ih2.T        # (I, 4H)
    w_hh1_t, w_hh2_t = w_hh1.T, w_hh2.T        # (H, 4H)
    b1 = b_ih1 + b_hh1
    b2 = b_ih2 + b_hh2

    # Merged gate layout (8H columns, gate-major / lstm-minor):
    #   [i1, i2 | f1, f2 | g1, g2 | o1, o2]
    gi1, gi2 = gate_blocks(w_ih1_t), gate_blocks(w_ih2_t)
    zI = jnp.zeros((I, H), jnp.float32)
    w_ih_cat = jnp.concatenate([
        jnp.concatenate([gi1[0], zI, gi1[1], zI, gi1[2], zI, gi1[3], zI], axis=1),
        jnp.concatenate([zI, gi2[0], zI, gi2[1], zI, gi2[2], zI, gi2[3]], axis=1),
    ], axis=0)                                  # (2I, 8H)

    gh1, gh2 = gate_blocks(w_hh1_t), gate_blocks(w_hh2_t)
    zH = jnp.zeros((H, H), jnp.float32)
    w_hh_cat = jnp.concatenate([
        jnp.concatenate([gh1[0], zH, gh1[1], zH, gh1[2], zH, gh1[3], zH], axis=1),
        jnp.concatenate([zH, gh2[0], zH, gh2[1], zH, gh2[2], zH, gh2[3]], axis=1),
    ], axis=0)                                  # (2H, 8H)

    b1c = [b1[k * H:(k + 1) * H] for k in range(4)]
    b2c = [b2[k * H:(k + 1) * H] for k in range(4)]
    b_cat = jnp.concatenate(
        [b1c[0], b2c[0], b1c[1], b2c[1], b1c[2], b2c[2], b1c[3], b2c[3]])[None, :]

    # Fold the x2 pre-scale of tanh(x) = 2*sigmoid(2x) - 1 into the g-gate
    # columns (columns 4H:6H of the 8H slab) so the kernel needs only one
    # sigmoid per step (zero extra per-step cost).
    scale = jnp.ones((8 * H,), jnp.float32).at[4 * H:6 * H].set(2.0)[None, :]
    w_ih_cat = w_ih_cat * scale
    w_hh_cat = w_hh_cat * scale
    b_cat = b_cat * scale

    return {
        # kernel weights (merged)
        "w_ih_cat": w_ih_cat,                   # (2I, 8H)
        "w_hh_cat": w_hh_cat,                   # (2H, 8H) block-diag
        "b_cat": b_cat,                         # (1, 8H)
        "w_fc_t": w_fc.T,                       # (2H, O)
        "b_fc": b_fc[None, :],                  # (1, O)
        # raw weights (reference only)
        "w_ih1_t": w_ih1_t, "w_hh1_t": w_hh1_t, "b1": b1[None, :],
        "w_ih2_t": w_ih2_t, "w_hh2_t": w_hh2_t, "b2": b2[None, :],
    }


if __name__ == "__main__":
    INPUT_SIZE = 16
    HIDDEN_SIZE = 32
    OUTPUT_SIZE = 8
    BATCH = 2
    SEQ1 = 8
    SEQ2 = 8

    key = jax.random.PRNGKey(0)
    k_p, k_x1, k_x2 = jax.random.split(key, 3)

    params = init_params(k_p, INPUT_SIZE, HIDDEN_SIZE, OUTPUT_SIZE)
    inpt1 = jax.random.normal(k_x1, (BATCH, SEQ1, INPUT_SIZE), jnp.float32)
    inpt2 = jax.random.normal(k_x2, (BATCH, SEQ2, INPUT_SIZE), jnp.float32)

    fwd = jax.jit(functools.partial(lstm_module_forward, params))
    out = fwd(inpt1, inpt2)
    out = jax.block_until_ready(out)

    ref = _forward_ref(params, inpt1, inpt2)
    assert out.shape == (BATCH, OUTPUT_SIZE), out.shape
    assert jnp.allclose(out, ref, rtol=1e-4, atol=1e-4), (
        f"max abs diff {jnp.max(jnp.abs(out - ref))}")

    print("KERNEL_OK")
</pallas_src>

<mosaic_0001>
module attributes {stable_mosaic.version = 11 : i64} {
  func.func @_fused_kernel(%arg0: memref<64x32xf32, #tpu.memory_space<vmem>>, %arg1: memref<32x256xf32, #tpu.memory_space<vmem>>, %arg2: memref<64x256xf32, #tpu.memory_space<vmem>>, %arg3: memref<1x256xf32, #tpu.memory_space<vmem>>, %arg4: memref<64x8xf32, #tpu.memory_space<vmem>>, %arg5: memref<1x8xf32, #tpu.memory_space<vmem>>, %arg6: memref<8x8xf32, #tpu.memory_space<vmem>>) attributes {dimension_semantics = [], scalar_prefetch = 0 : i64, scratch_operands = 0 : i64, tpu.core_type = #tpu.core_type<tc>} {
    %c0 = arith.constant 0 : index
    %c0_0 = arith.constant 0 : index
    %0 = vector.load %arg2[%c0, %c0_0] : memref<64x256xf32, #tpu.memory_space<vmem>>, vector<64x256xf32>
    %c0_1 = arith.constant 0 : index
    %c0_2 = arith.constant 0 : index
    %1 = vector.load %arg0[%c0_1, %c0_2] : memref<64x32xf32, #tpu.memory_space<vmem>>, vector<64x32xf32>
    %c0_3 = arith.constant 0 : index
    %c0_4 = arith.constant 0 : index
    %2 = vector.load %arg1[%c0_3, %c0_4] : memref<32x256xf32, #tpu.memory_space<vmem>>, vector<32x256xf32>
    %cst = arith.constant dense<0.000000e+00> : vector<64x256xf32>
    %3 = tpu.matmul %1, %2, %cst {dimension_numbers = #tpu.dot_dimension_numbers<[1], [0], [0], [1], [0, 0, 1, 1], [], []>} : vector<64x32xf32>, vector<32x256xf32>, vector<64x256xf32> -> vector<64x256xf32>
    %c0_5 = arith.constant 0 : index
    %c0_6 = arith.constant 0 : index
    %4 = vector.load %arg3[%c0_5, %c0_6] : memref<1x256xf32, #tpu.memory_space<vmem>>, vector<1x256xf32>
    %5 = vector.broadcast %4 : vector<1x256xf32> to vector<64x256xf32>
    %6 = arith.addf %3, %5 : vector<64x256xf32>
    %cst_7 = arith.constant 0.000000e+00 : f32
    %7 = vector.broadcast %cst_7 : f32 to vector<8x64xf32>
    %cst_8 = arith.constant 0.000000e+00 : f32
    %8 = vector.broadcast %cst_8 : f32 to vector<8x64xf32>
    %9 = vector.extract_strided_slice %6 {offsets = [0, 0], sizes = [8, 256], strides = [1, 1]} : vector<64x256xf32> to vector<8x256xf32>
    %cst_9 = arith.constant dense<0.000000e+00> : vector<8x256xf32>
    %10 = tpu.matmul %7, %0, %cst_9 {dimension_numbers = #tpu.dot_dimension_numbers<[1], [0], [0], [1], [0, 0, 1, 1], [], []>} : vector<8x64xf32>, vector<64x256xf32>, vector<8x256xf32> -> vector<8x256xf32>
    %11 = arith.addf %9, %10 : vector<8x256xf32>
    %12 = arith.negf %11 : vector<8x256xf32>
    %13 = math.exp %12 : vector<8x256xf32>
    %cst_10 = arith.constant 1.000000e+00 : f32
    %14 = vector.broadcast %cst_10 : f32 to vector<8x256xf32>
    %15 = arith.addf %14, %13 : vector<8x256xf32>
    %16 = arith.divf %14, %15 : vector<8x256xf32>
    %17 = vector.extract_strided_slice %16 {offsets = [0, 0], sizes = [8, 64], strides = [1, 1]} : vector<8x256xf32> to vector<8x64xf32>
    %18 = vector.extract_strided_slice %16 {offsets = [0, 64], sizes = [8, 64], strides = [1, 1]} : vector<8x256xf32> to vector<8x64xf32>
    %19 = vector.extract_strided_slice %16 {offsets = [0, 128], sizes = [8, 64], strides = [1, 1]} : vector<8x256xf32> to vector<8x64xf32>
    %cst_11 = arith.constant 2.000000e+00 : f32
    %20 = vector.broadcast %cst_11 : f32 to vector<8x64xf32>
    %21 = arith.mulf %20, %19 : vector<8x64xf32>
    %cst_12 = arith.constant 1.000000e+00 : f32
    %22 = vector.broadcast %cst_12 : f32 to vector<8x64xf32>
    %23 = arith.subf %21, %22 : vector<8x64xf32>
    %24 = vector.extract_strided_slice %16 {offsets = [0, 192], sizes = [8, 64], strides = [1, 1]} : vector<8x256xf32> to vector<8x64xf32>
    %25 = arith.mulf %18, %8 : vector<8x64xf32>
    %26 = arith.mulf %17, %23 : vector<8x64xf32>
    %27 = arith.addf %25, %26 : vector<8x64xf32>
    %28 = math.tanh %27 : vector<8x64xf32>
    %29 = arith.mulf %24, %28 : vector<8x64xf32>
    %30 = vector.extract_strided_slice %6 {offsets = [8, 0], sizes = [8, 256], strides = [1, 1]} : vector<64x256xf32> to vector<8x256xf32>
    %cst_13 = arith.constant dense<0.000000e+00> : vector<8x256xf32>
    %31 = tpu.matmul %29, %0, %cst_13 {dimension_numbers = #tpu.dot_dimension_numbers<[1], [0], [0], [1], [0, 0, 1, 1], [], []>} : vector<8x64xf32>, vector<64x256xf32>, vector<8x256xf32> -> vector<8x256xf32>
    %32 = arith.addf %30, %31 : vector<8x256xf32>
    %33 = arith.negf %32 : vector<8x256xf32>
    %34 = math.exp %33 : vector<8x256xf32>
    %cst_14 = arith.constant 1.000000e+00 : f32
    %35 = vector.broadcast %cst_14 : f32 to vector<8x256xf32>
    %36 = arith.addf %35, %34 : vector<8x256xf32>
    %37 = arith.divf %35, %36 : vector<8x256xf32>
    %38 = vector.extract_strided_slice %37 {offsets = [0, 0], sizes = [8, 64], strides = [1, 1]} : vector<8x256xf32> to vector<8x64xf32>
    %39 = vector.extract_strided_slice %37 {offsets = [0, 64], sizes = [8, 64], strides = [1, 1]} : vector<8x256xf32> to vector<8x64xf32>
    %40 = vector.extract_strided_slice %37 {offsets = [0, 128], sizes = [8, 64], strides = [1, 1]} : vector<8x256xf32> to vector<8x64xf32>
    %cst_15 = arith.constant 2.000000e+00 : f32
    %41 = vector.broadcast %cst_15 : f32 to vector<8x64xf32>
    %42 = arith.mulf %41, %40 : vector<8x64xf32>
    %cst_16 = arith.constant 1.000000e+00 : f32
    %43 = vector.broadcast %cst_16 : f32 to vector<8x64xf32>
    %44 = arith.subf %42, %43 : vector<8x64xf32>
    %45 = vector.extract_strided_slice %37 {offsets = [0, 192], sizes = [8, 64], strides = [1, 1]} : vector<8x256xf32> to vector<8x64xf32>
    %46 = arith.mulf %39, %27 : vector<8x64xf32>
    %47 = arith.mulf %38, %44 : vector<8x64xf32>
    %48 = arith.addf %46, %47 : vector<8x64xf32>
    %49 = math.tanh %48 : vector<8x64xf32>
    %50 = arith.mulf %45, %49 : vector<8x64xf32>
    %51 = vector.extract_strided_slice %6 {offsets = [16, 0], sizes = [8, 256], strides = [1, 1]} : vector<64x256xf32> to vector<8x256xf32>
    %cst_17 = arith.constant dense<0.000000e+00> : vector<8x256xf32>
    %52 = tpu.matmul %50, %0, %cst_17 {dimension_numbers = #tpu.dot_dimension_numbers<[1], [0], [0], [1], [0, 0, 1, 1], [], []>} : vector<8x64xf32>, vector<64x256xf32>, vector<8x256xf32> -> vector<8x256xf32>
    %53 = arith.addf %51, %52 : vector<8x256xf32>
    %54 = arith.negf %53 : vector<8x256xf32>
    %55 = math.exp %54 : vector<8x256xf32>
    %cst_18 = arith.constant 1.000000e+00 : f32
    %56 = vector.broadcast %cst_18 : f32 to vector<8x256xf32>
    %57 = arith.addf %56, %55 : vector<8x256xf32>
    %58 = arith.divf %56, %57 : vector<8x256xf32>
    %59 = vector.extract_strided_slice %58 {offsets = [0, 0], sizes = [8, 64], strides = [1, 1]} : vector<8x256xf32> to vector<8x64xf32>
    %60 = vector.extract_strided_slice %58 {offsets = [0, 64], sizes = [8, 64], strides = [1, 1]} : vector<8x256xf32> to vector<8x64xf32>
    %61 = vector.extract_strided_slice %58 {offsets = [0, 128], sizes = [8, 64], strides = [1, 1]} : vector<8x256xf32> to vector<8x64xf32>
    %cst_19 = arith.constant 2.000000e+00 : f32
    %62 = vector.broadcast %cst_19 : f32 to vector<8x64xf32>
    %63 = arith.mulf %62, %61 : vector<8x64xf32>
    %cst_20 = arith.constant 1.000000e+00 : f32
    %64 = vector.broadcast %cst_20 : f32 to vector<8x64xf32>
    %65 = arith.subf %63, %64 : vector<8x64xf32>
    %66 = vector.extract_strided_slice %58 {offsets = [0, 192], sizes = [8, 64], strides = [1, 1]} : vector<8x256xf32> to vector<8x64xf32>
    %67 = arith.mulf %60, %48 : vector<8x64xf32>
    %68 = arith.mulf %59, %65 : vector<8x64xf32>
    %69 = arith.addf %67, %68 : vector<8x64xf32>
    %70 = math.tanh %69 : vector<8x64xf32>
    %71 = arith.mulf %66, %70 : vector<8x64xf32>
    %72 = vector.extract_strided_slice %6 {offsets = [24, 0], sizes = [8, 256], strides = [1, 1]} : vector<64x256xf32> to vector<8x256xf32>
    %cst_21 = arith.constant dense<0.000000e+00> : vector<8x256xf32>
    %73 = tpu.matmul %71, %0, %cst_21 {dimension_numbers = #tpu.dot_dimension_numbers<[1], [0], [0], [1], [0, 0, 1, 1], [], []>} : vector<8x64xf32>, vector<64x256xf32>, vector<8x256xf32> -> vector<8x256xf32>
    %74 = arith.addf %72, %73 : vector<8x256xf32>
    %75 = arith.negf %74 : vector<8x256xf32>
    %76 = math.exp %75 : vector<8x256xf32>
    %cst_22 = arith.constant 1.000000e+00 : f32
    %77 = vector.broadcast %cst_22 : f32 to vector<8x256xf32>
    %78 = arith.addf %77, %76 : vector<8x256xf32>
    %79 = arith.divf %77, %78 : vector<8x256xf32>
    %80 = vector.extract_strided_slice %79 {offsets = [0, 0], sizes = [8, 64], strides = [1, 1]} : vector<8x256xf32> to vector<8x64xf32>
    %81 = vector.extract_strided_slice %79 {offsets = [0, 64], sizes = [8, 64], strides = [1, 1]} : vector<8x256xf32> to vector<8x64xf32>
    %82 = vector.extract_strided_slice %79 {offsets = [0, 128], sizes = [8, 64], strides = [1, 1]} : vector<8x256xf32> to vector<8x64xf32>
    %cst_23 = arith.constant 2.000000e+00 : f32
    %83 = vector.broadcast %cst_23 : f32 to vector<8x64xf32>
    %84 = arith.mulf %83, %82 : vector<8x64xf32>
    %cst_24 = arith.constant 1.000000e+00 : f32
    %85 = vector.broadcast %cst_24 : f32 to vector<8x64xf32>
    %86 = arith.subf %84, %85 : vector<8x64xf32>
    %87 = vector.extract_strided_slice %79 {offsets = [0, 192], sizes = [8, 64], strides = [1, 1]} : vector<8x256xf32> to vector<8x64xf32>
    %88 = arith.mulf %81, %69 : vector<8x64xf32>
    %89 = arith.mulf %80, %86 : vector<8x64xf32>
    %90 = arith.addf %88, %89 : vector<8x64xf32>
    %91 = math.tanh %90 : vector<8x64xf32>
    %92 = arith.mulf %87, %91 : vector<8x64xf32>
    %93 = vector.extract_strided_slice %6 {offsets = [32, 0], sizes = [8, 256], strides = [1, 1]} : vector<64x256xf32> to vector<8x256xf32>
    %cst_25 = arith.constant dense<0.000000e+00> : vector<8x256xf32>
    %94 = tpu.matmul %92, %0, %cst_25 {dimension_numbers = #tpu.dot_dimension_numbers<[1], [0], [0], [1], [0, 0, 1, 1], [], []>} : vector<8x64xf32>, vector<64x256xf32>, vector<8x256xf32> -> vector<8x256xf32>
    %95 = arith.addf %93, %94 : vector<8x256xf32>
    %96 = arith.negf %95 : vector<8x256xf32>
    %97 = math.exp %96 : vector<8x256xf32>
    %cst_26 = arith.constant 1.000000e+00 : f32
    %98 = vector.broadcast %cst_26 : f32 to vector<8x256xf32>
    %99 = arith.addf %98, %97 : vector<8x256xf32>
    %100 = arith.divf %98, %99 : vector<8x256xf32>
    %101 = vector.extract_strided_slice %100 {offsets = [0, 0], sizes = [8, 64], strides = [1, 1]} : vector<8x256xf32> to vector<8x64xf32>
    %102 = vector.extract_strided_slice %100 {offsets = [0, 64], sizes = [8, 64], strides = [1, 1]} : vector<8x256xf32> to vector<8x64xf32>
    %103 = vector.extract_strided_slice %100 {offsets = [0, 128], sizes = [8, 64], strides = [1, 1]} : vector<8x256xf32> to vector<8x64xf32>
    %cst_27 = arith.constant 2.000000e+00 : f32
    %104 = vector.broadcast %cst_27 : f32 to vector<8x64xf32>
    %105 = arith.mulf %104, %103 : vector<8x64xf32>
    %cst_28 = arith.constant 1.000000e+00 : f32
    %106 = vector.broadcast %cst_28 : f32 to vector<8x64xf32>
    %107 = arith.subf %105, %106 : vector<8x64xf32>
    %108 = vector.extract_strided_slice %100 {offsets = [0, 192], sizes = [8, 64], strides = [1, 1]} : vector<8x256xf32> to vector<8x64xf32>
    %109 = arith.mulf %102, %90 : vector<8x64xf32>
    %110 = arith.mulf %101, %107 : vector<8x64xf32>
    %111 = arith.addf %109, %110 : vector<8x64xf32>
    %112 = math.tanh %111 : vector<8x64xf32>
    %113 = arith.mulf %108, %112 : vector<8x64xf32>
    %114 = vector.extract_strided_slice %6 {offsets = [40, 0], sizes = [8, 256], strides = [1, 1]} : vector<64x256xf32> to vector<8x256xf32>
    %cst_29 = arith.constant dense<0.000000e+00> : vector<8x256xf32>
    %115 = tpu.matmul %113, %0, %cst_29 {dimension_numbers = #tpu.dot_dimension_numbers<[1], [0], [0], [1], [0, 0, 1, 1], [], []>} : vector<8x64xf32>, vector<64x256xf32>, vector<8x256xf32> -> vector<8x256xf32>
    %116 = arith.addf %114, %115 : vector<8x256xf32>
    %117 = arith.negf %116 : vector<8x256xf32>
    %118 = math.exp %117 : vector<8x256xf32>
    %cst_30 = arith.constant 1.000000e+00 : f32
    %119 = vector.broadcast %cst_30 : f32 to vector<8x256xf32>
    %120 = arith.addf %119, %118 : vector<8x256xf32>
    %121 = arith.divf %119, %120 : vector<8x256xf32>
    %122 = vector.extract_strided_slice %121 {offsets = [0, 0], sizes = [8, 64], strides = [1, 1]} : vector<8x256xf32> to vector<8x64xf32>
    %123 = vector.extract_strided_slice %121 {offsets = [0, 64], sizes = [8, 64], strides = [1, 1]} : vector<8x256xf32> to vector<8x64xf32>
    %124 = vector.extract_strided_slice %121 {offsets = [0, 128], sizes = [8, 64], strides = [1, 1]} : vector<8x256xf32> to vector<8x64xf32>
    %cst_31 = arith.constant 2.000000e+00 : f32
    %125 = vector.broadcast %cst_31 : f32 to vector<8x64xf32>
    %126 = arith.mulf %125, %124 : vector<8x64xf32>
    %cst_32 = arith.constant 1.000000e+00 : f32
    %127 = vector.broadcast %cst_32 : f32 to vector<8x64xf32>
    %128 = arith.subf %126, %127 : vector<8x64xf32>
    %129 = vector.extract_strided_slice %121 {offsets = [0, 192], sizes = [8, 64], strides = [1, 1]} : vector<8x256xf32> to vector<8x64xf32>
    %130 = arith.mulf %123, %111 : vector<8x64xf32>
    %131 = arith.mulf %122, %128 : vector<8x64xf32>
    %132 = arith.addf %130, %131 : vector<8x64xf32>
    %133 = math.tanh %132 : vector<8x64xf32>
    %134 = arith.mulf %129, %133 : vector<8x64xf32>
    %135 = vector.extract_strided_slice %6 {offsets = [48, 0], sizes = [8, 256], strides = [1, 1]} : vector<64x256xf32> to vector<8x256xf32>
    %cst_33 = arith.constant dense<0.000000e+00> : vector<8x256xf32>
    %136 = tpu.matmul %134, %0, %cst_33 {dimension_numbers = #tpu.dot_dimension_numbers<[1], [0], [0], [1], [0, 0, 1, 1], [], []>} : vector<8x64xf32>, vector<64x256xf32>, vector<8x256xf32> -> vector<8x256xf32>
    %137 = arith.addf %135, %136 : vector<8x256xf32>
    %138 = arith.negf %137 : vector<8x256xf32>
    %139 = math.exp %138 : vector<8x256xf32>
    %cst_34 = arith.constant 1.000000e+00 : f32
    %140 = vector.broadcast %cst_34 : f32 to vector<8x256xf32>
    %141 = arith.addf %140, %139 : vector<8x256xf32>
    %142 = arith.divf %140, %141 : vector<8x256xf32>
    %143 = vector.extract_strided_slice %142 {offsets = [0, 0], sizes = [8, 64], strides = [1, 1]} : vector<8x256xf32> to vector<8x64xf32>
    %144 = vector.extract_strided_slice %142 {offsets = [0, 64], sizes = [8, 64], strides = [1, 1]} : vector<8x256xf32> to vector<8x64xf32>
    %145 = vector.extract_strided_slice %142 {offsets = [0, 128], sizes = [8, 64], strides = [1, 1]} : vector<8x256xf32> to vector<8x64xf32>
    %cst_35 = arith.constant 2.000000e+00 : f32
    %146 = vector.broadcast %cst_35 : f32 to vector<8x64xf32>
    %147 = arith.mulf %146, %145 : vector<8x64xf32>
    %cst_36 = arith.constant 1.000000e+00 : f32
    %148 = vector.broadcast %cst_36 : f32 to vector<8x64xf32>
    %149 = arith.subf %147, %148 : vector<8x64xf32>
    %150 = vector.extract_strided_slice %142 {offsets = [0, 192], sizes = [8, 64], strides = [1, 1]} : vector<8x256xf32> to vector<8x64xf32>
    %151 = arith.mulf %144, %132 : vector<8x64xf32>
    %152 = arith.mulf %143, %149 : vector<8x64xf32>
    %153 = arith.addf %151, %152 : vector<8x64xf32>
    %154 = math.tanh %153 : vector<8x64xf32>
    %155 = arith.mulf %150, %154 : vector<8x64xf32>
    %156 = vector.extract_strided_slice %6 {offsets = [56, 0], sizes = [8, 256], strides = [1, 1]} : vector<64x256xf32> to vector<8x256xf32>
    %cst_37 = arith.constant dense<0.000000e+00> : vector<8x256xf32>
    %157 = tpu.matmul %155, %0, %cst_37 {dimension_numbers = #tpu.dot_dimension_numbers<[1], [0], [0], [1], [0, 0, 1, 1], [], []>} : vector<8x64xf32>, vector<64x256xf32>, vector<8x256xf32> -> vector<8x256xf32>
    %158 = arith.addf %156, %157 : vector<8x256xf32>
    %159 = arith.negf %158 : vector<8x256xf32>
    %160 = math.exp %159 : vector<8x256xf32>
    %cst_38 = arith.constant 1.000000e+00 : f32
    %161 = vector.broadcast %cst_38 : f32 to vector<8x256xf32>
    %162 = arith.addf %161, %160 : vector<8x256xf32>
    %163 = arith.divf %161, %162 : vector<8x256xf32>
    %164 = vector.extract_strided_slice %163 {offsets = [0, 0], sizes = [8, 64], strides = [1, 1]} : vector<8x256xf32> to vector<8x64xf32>
    %165 = vector.extract_strided_slice %163 {offsets = [0, 64], sizes = [8, 64], strides = [1, 1]} : vector<8x256xf32> to vector<8x64xf32>
    %166 = vector.extract_strided_slice %163 {offsets = [0, 128], sizes = [8, 64], strides = [1, 1]} : vector<8x256xf32> to vector<8x64xf32>
    %cst_39 = arith.constant 2.000000e+00 : f32
    %167 = vector.broadcast %cst_39 : f32 to vector<8x64xf32>
    %168 = arith.mulf %167, %166 : vector<8x64xf32>
    %cst_40 = arith.constant 1.000000e+00 : f32
    %169 = vector.broadcast %cst_40 : f32 to vector<8x64xf32>
    %170 = arith.subf %168, %169 : vector<8x64xf32>
    %171 = vector.extract_strided_slice %163 {offsets = [0, 192], sizes = [8, 64], strides = [1, 1]} : vector<8x256xf32> to vector<8x64xf32>
    %172 = arith.mulf %165, %153 : vector<8x64xf32>
    %173 = arith.mulf %164, %170 : vector<8x64xf32>
    %174 = arith.addf %172, %173 : vector<8x64xf32>
    %175 = math.tanh %174 : vector<8x64xf32>
    %176 = arith.mulf %171, %175 : vector<8x64xf32>
    %c0_41 = arith.constant 0 : index
    %c0_42 = arith.constant 0 : index
    %177 = vector.load %arg4[%c0_41, %c0_42] : memref<64x8xf32, #tpu.memory_space<vmem>>, vector<64x8xf32>
    %cst_43 = arith.constant dense<0.000000e+00> : vector<8x8xf32>
    %178 = tpu.matmul %176, %177, %cst_43 {dimension_numbers = #tpu.dot_dimension_numbers<[1], [0], [0], [1], [0, 0, 1, 1], [], []>} : vector<8x64xf32>, vector<64x8xf32>, vector<8x8xf32> -> vector<8x8xf32>
    %c0_44 = arith.constant 0 : index
    %c0_45 = arith.constant 0 : index
    %179 = vector.load %arg5[%c0_44, %c0_45] : memref<1x8xf32, #tpu.memory_space<vmem>>, vector<1x8xf32>
    %180 = vector.broadcast %179 : vector<1x8xf32> to vector<8x8xf32>
    %181 = arith.addf %178, %180 : vector<8x8xf32>
    %c0_46 = arith.constant 0 : index
    %c0_47 = arith.constant 0 : index
    %182 = vector.load %arg6[%c0_46, %c0_47] : memref<8x8xf32, #tpu.memory_space<vmem>>, vector<8x8xf32>
    tpu.vector_store %arg6[%c0_46, %c0_47], %181 {strides = array<i32>} : memref<8x8xf32, #tpu.memory_space<vmem>>, vector<8x8xf32>,
    return
  }
}

</mosaic_0001>

<llo_original>
// kernel: lstm_module_forward.1
$region0: #{lstm_module_forward.1}
  #allocation0 [shape = 'u32[]', space=smem, size = 0x4, offset = 0x4, fixed_abs, tag = 'smem constant byte address 0x4 - core index']
  #allocation1 [shape = 'u32[144,128]{1,0:T(1,128)}', space=vmem, size = 0x12000, scoped, tag = 'internal scratch']
  %s0 = inlined_call_operand.vmem [shape: f32[64,32], index: 0, kind: input, shape index: {}]
  %s1 = inlined_call_operand.hbm [shape: f32[32,256], index: 1, kind: input, shape index: {}]
  %s2 = inlined_call_operand.vmem [shape: f32[64,256], index: 2, kind: input, shape index: {}]
  %s3 = inlined_call_operand.vmem [shape: f32[1,256], index: 3, kind: input, shape index: {}]
  %s4 = inlined_call_operand.vmem [shape: f32[64,8], index: 4, kind: input, shape index: {}]
  %s5 = inlined_call_operand.vmem [shape: f32[1,8], index: 5, kind: input, shape index: {}]
  %s6 = inlined_call_operand.vmem [shape: f32[8,8], index: 6, kind: output, shape index: {}]
  %s7 = sld [smem:[#allocation0]]
  $region38: #{lstm_module_forward.1} parent=0
    _
  %s9 = ssub.s32 1, %s7
  %s10 = scalar_select 0, %s9, %s7
  $region1: #{lstm_module_forward.1} parent=0
    #allocation2 [shape = 'u8[32768]{0}', space=vmem, size = 0x8000, scoped, tag = 'input window, operand 1, single buffered']
    #allocation3 [shape = 's32[1]{0}', space=sflag, size = 0x4, scoped, tag = 'scoped memory for lstm_module_forward.1']
    %11 = vsyncpa [#allocation3], 0
    // Predicated region
    $region2: #{lstm_module_forward.1} parent=1 // pred_check
      _
    $region3: #{lstm_module_forward.1} parent=1 // pred_check_branch
      %13 = sbr.rel (0) target = $region5
    $region4: #{lstm_module_forward.1} parent=1 // pred_region
      _
    $region5: #{lstm_module_forward.1} parent=1 // pred_fallthru
      _
    // Predicated region
    $region6: #{lstm_module_forward.1} parent=1 // pred_check
      _
    $region7: #{lstm_module_forward.1} parent=1 // pred_check_branch
      %15 = sbr.rel (0) target = $region9
    $region8: #{lstm_module_forward.1} parent=1 // pred_region
      %s17 = ssub.s32 1024, 1024
      %18 = vsyncadd [#allocation3], %s17
      %s19 = sshll.u32 [#allocation2], 4
      %s20 = int_to_ptr.vmem [resolvable:$true] %s19
      %25 = dma.hbm_to_vmem [thread:$0]  %s1, 1024, %s20, [#allocation3], 256, 256, 16
    $region9: #{lstm_module_forward.1} parent=1 // pred_fallthru
      _
    // Predicated region
    $region10: #{lstm_module_forward.1} parent=1 // pred_check
      _
    $region11: #{lstm_module_forward.1} parent=1 // pred_check_branch
      %27 = sbr.rel (0) target = $region13
    $region12: #{lstm_module_forward.1} parent=1 // pred_region
      _
    $region13: #{lstm_module_forward.1} parent=1 // pred_fallthru
      _
    // Predicated region
    $region14: #{lstm_module_forward.1} parent=1 // pred_check
      _
    $region15: #{lstm_module_forward.1} parent=1 // pred_check_branch
      %29 = sbr.rel (0) target = $region17
    $region16: #{lstm_module_forward.1} parent=1 // pred_region
      _
    $region17: #{lstm_module_forward.1} parent=1 // pred_fallthru
      _
    // Predicated region
    $region18: #{lstm_module_forward.1} parent=1 // pred_check
      _
    $region19: #{lstm_module_forward.1} parent=1 // pred_check_branch
      %31 = sbr.rel (0) target = $region21
    $region20: #{lstm_module_forward.1} parent=1 // pred_region
      _
    $region21: #{lstm_module_forward.1} parent=1 // pred_fallthru
      _
    // Predicated region
    $region22: #{lstm_module_forward.1} parent=1 // pred_check
      _
    $region23: #{lstm_module_forward.1} parent=1 // pred_check_branch
      %33 = sbr.rel (0) target = $region25
    $region24: #{lstm_module_forward.1} parent=1 // pred_region
      _
    $region25: #{lstm_module_forward.1} parent=1 // pred_fallthru
      _
    // Predicated region
    $region26: #{lstm_module_forward.1} parent=1 // pred_check
      _
    $region27: #{lstm_module_forward.1} parent=1 // pred_check_branch
      %35 = sbr.rel (0) target = $region29
    $region28: #{lstm_module_forward.1} parent=1 // pred_region
      %36 = dma.done [#allocation3], 1024
    $region29: #{lstm_module_forward.1} parent=1 // pred_fallthru
      _
    %v37 = vld [vmem:[%s2] sm:$0xff]
    %v38 = vld [vmem:[%s2 + $0x8] sm:$0xff]
    %v39 = vld [vmem:[%s2 + $0x10] sm:$0xff]
    %v40 = vld [vmem:[%s2 + $0x18] sm:$0xff]
    %v41 = vld [vmem:[%s2 + $0x20] sm:$0xff]
    %v42 = vld [vmem:[%s2 + $0x28] sm:$0xff]
    %v43 = vld [vmem:[%s2 + $0x30] sm:$0xff]
    %v44 = vld [vmem:[%s2 + $0x38] sm:$0xff]
    %v45 = vld [vmem:[%s2 + $0x40] sm:$0xff]
    %v46 = vld [vmem:[%s2 + $0x48] sm:$0xff]
    %v47 = vld [vmem:[%s2 + $0x50] sm:$0xff]
    %v48 = vld [vmem:[%s2 + $0x58] sm:$0xff]
    %v49 = vld [vmem:[%s2 + $0x60] sm:$0xff]
    %v50 = vld [vmem:[%s2 + $0x68] sm:$0xff]
    %v51 = vld [vmem:[%s2 + $0x70] sm:$0xff]
    %v52 = vld [vmem:[%s2 + $0x78] sm:$0xff]
    %v53 = vld [vmem:[%s0] sm:$0xff]
    %v54 = vld [vmem:[%s0 + $0x8] sm:$0xff]
    %v55 = vld [vmem:[%s0 + $0x10] sm:$0xff]
    %v56 = vld [vmem:[%s0 + $0x18] sm:$0xff]
    %v57 = vld [vmem:[%s0 + $0x20] sm:$0xff]
    %v58 = vld [vmem:[%s0 + $0x28] sm:$0xff]
    %v59 = vld [vmem:[%s0 + $0x30] sm:$0xff]
    %v60 = vld [vmem:[%s0 + $0x38] sm:$0xff]
    %v61 = vld [vmem:[#allocation2] sm:$0xff]
    %v62 = vld [vmem:[#allocation2 + $0x8] sm:$0xff]
    %v63 = vld [vmem:[#allocation2 + $0x10] sm:$0xff]
    %v64 = vld [vmem:[#allocation2 + $0x18] sm:$0xff]
    %v65 = vld [vmem:[#allocation2 + $0x20] sm:$0xff]
    %v66 = vld [vmem:[#allocation2 + $0x28] sm:$0xff]
    %v67 = vld [vmem:[#allocation2 + $0x30] sm:$0xff]
    %v68 = vld [vmem:[#allocation2 + $0x38] sm:$0xff]
    %v69 = vld [vmem:[%s3] sm:$0x3]
    %v71 = vlaneseq
    %v72 = vshrl.u32 %v71, 7
    %v73 = vsub.s32 0, %v72
    %v74 = vrot.slane %v69, %v73
    %v75 = vlaneseq
    %v76 = vshrl.u32 %v75, 7
    %v77 = vsub.s32 1, %v76
    %v78 = vrot.slane %v69, %v77
    %vm81 = vcmask 261120
    %v83 = vsel %vm81, %v53, 0
    %v86 = vsel %vm81, %v54, 0
    %v89 = vsel %vm81, %v55, 0
    %v92 = vsel %vm81, %v56, 0
    %v95 = vsel %vm81, %v57, 0
    %v98 = vsel %vm81, %v58, 0
    %v101 = vsel %vm81, %v59, 0
    %v104 = vsel %vm81, %v60, 0
    %106 = vmatprep.subr.mxu0 %v62
    %107 = vmatpush1.msra.mxu0 %v61
    %108 = vmatprep.subr.mxu0 %v64
    %109 = vmatpush1.msra.mxu0 %v63
    %110 = vmatprep.subr.mxu0 %v66
    %111 = vmatpush1.msra.mxu0 %v65
    %112 = vmatprep.subr.mxu0 %v68
    %113 = vmatpush1.msra.mxu0 %v67
    %114 = vmatprep.subr.mxu0 0.0
    %115 = vmatpush1.msra.mxu0 0.0
    %116 = vmatprep.subr.mxu0 0.0
    %117 = vmatpush1.msra.mxu0 0.0
    %118 = vmatprep.subr.mxu0 0.0
    %119 = vmatpush1.msra.mxu0 0.0
    %120 = vmatprep.subr.mxu0 0.0
    %121 = vmatpush1.msra.mxu0 0.0
    %122 = vmatprep.subr.mxu0 0.0
    %123 = vmatpush1.msra.mxu0 0.0
    %124 = vmatprep.subr.mxu0 0.0
    %125 = vmatpush1.msra.mxu0 0.0
    %126 = vmatprep.subr.mxu0 0.0
    %127 = vmatpush1.msra.mxu0 0.0
    %128 = vmatprep.subr.mxu0 0.0
    %129 = vmatpush1.msra.mxu0 0.0
    %130 = vmatprep.subr.mxu0 0.0
    %131 = vmatpush1.msra.mxu0 0.0
    %132 = vmatprep.subr.mxu0 0.0
    %133 = vmatpush1.msra.mxu0 0.0
    %134 = vmatprep.subr.mxu0 0.0
    %135 = vmatpush1.msra.mxu0 0.0
    %136 = vmatprep.subr.mxu0 0.0
    %137 = vmatpush1.msra.mxu0 0.0
    %138 = vmatprep.subr.mxu0 0.0
    %139 = vmatpush1.msra.mxu0 0.0
    %140 = vmatprep.subr.mxu0 0.0
    %141 = vmatpush1.msra.mxu0 0.0
    %142 = vmatprep.subr.mxu0 0.0
    %143 = vmatpush1.msra.mxu0 0.0
    %144 = vmatprep.subr.mxu0 0.0
    %145 = vmatpush1.msra.mxu0 0.0
    %146 = vmatprep.subr.mxu0 0.0
    %147 = vmatpush1.msra.mxu0 0.0
    %148 = vmatprep.subr.mxu0 0.0
    %149 = vmatpush1.msra.mxu0 0.0
    %150 = vmatprep.subr.mxu0 0.0
    %151 = vmatpush1.msra.mxu0 0.0
    %152 = vmatprep.subr.mxu0 0.0
    %153 = vmatpush1.msra.mxu0 0.0
    %154 = vmatprep.subr.mxu0 0.0
    %155 = vmatpush1.msra.mxu0 0.0
    %156 = vmatprep.subr.mxu0 0.0
    %157 = vmatpush1.msra.mxu0 0.0
    %158 = vmatprep.subr.mxu0 0.0
    %159 = vmatpush1.msra.mxu0 0.0
    %160 = vmatprep.subr.mxu0 0.0
    %161 = vmatpush1.msra.mxu0 0.0
    %162 = vmatprep.subr.mxu0 0.0
    %163 = vmatpush1.msra.mxu0 0.0
    %164 = vmatprep.subr.mxu0 0.0
    %165 = vmatpush1.msra.mxu0 0.0
    %166 = vmatprep.subr.mxu0 0.0
    %167 = vmatpush1.msra.mxu0 0.0
    %168 = vmatprep.subr.mxu0 0.0
    %169 = vmatpush1.msra.mxu0 0.0
    %170 = vmatprep.mubr.f32.mxu0 0.0
    %171 = vmatmul.mubr.f32.gmra.mrb[0].mxu0 %v83
    %v172 = vpop.f32.mrb[0].mxu0
    %v173 = vadd.f32 %v74, %v172
    %v174 = vpop.f32.mrb[0].mxu0
    %v175 = vadd.f32 %v78, %v174
    %176 = vmatprep.mubr.f32.mxu0 0.0
    %177 = vmatmul.mubr.f32.gmra.mrb[0].mxu0 %v86
    %v178 = vpop.f32.mrb[0].mxu0
    %v179 = vadd.f32 %v74, %v178
    %v180 = vpop.f32.mrb[0].mxu0
    %v181 = vadd.f32 %v78, %v180
    %182 = vmatprep.mubr.f32.mxu0 0.0
    %183 = vmatmul.mubr.f32.gmra.mrb[0].mxu0 %v89
    %v184 = vpop.f32.mrb[0].mxu0
    %v185 = vadd.f32 %v74, %v184
    %v186 = vpop.f32.mrb[0].mxu0
    %v187 = vadd.f32 %v78, %v186
    %188 = vmatprep.mubr.f32.mxu0 0.0
    %189 = vmatmul.mubr.f32.gmra.mrb[0].mxu0 %v92
    %v190 = vpop.f32.mrb[0].mxu0
    %v191 = vadd.f32 %v74, %v190
    %v192 = vpop.f32.mrb[0].mxu0
    %v193 = vadd.f32 %v78, %v192
    %194 = vmatprep.mubr.f32.mxu0 0.0
    %195 = vmatmul.mubr.f32.gmra.mrb[0].mxu0 %v95
    %v196 = vpop.f32.mrb[0].mxu0
    %v197 = vadd.f32 %v74, %v196
    %v198 = vpop.f32.mrb[0].mxu0
    %v199 = vadd.f32 %v78, %v198
    %200 = vmatprep.mubr.f32.mxu0 0.0
    %201 = vmatmul.mubr.f32.gmra.mrb[0].mxu0 %v98
    %v202 = vpop.f32.mrb[0].mxu0
    %v203 = vadd.f32 %v74, %v202
    %v204 = vpop.f32.mrb[0].mxu0
    %v205 = vadd.f32 %v78, %v204
    %206 = vmatprep.mubr.f32.mxu0 0.0
    %207 = vmatmul.mubr.f32.gmra.mrb[0].mxu0 %v101
    %v208 = vpop.f32.mrb[0].mxu0
    %v209 = vadd.f32 %v74, %v208
    %v210 = vpop.f32.mrb[0].mxu0
    %v211 = vadd.f32 %v78, %v210
    %212 = vmatprep.mubr.f32.mxu0 0.0
    %213 = vmatmul.mubr.f32.gmra.mrb[0].mxu0 %v104
    %v214 = vpop.f32.mrb[0].mxu0
    %v215 = vadd.f32 %v74, %v214
    %v216 = vpop.f32.mrb[0].mxu0
    %v217 = vadd.f32 %v78, %v216
    %218 = vdwg.mxu0
    %vm219 = vcmask 523264
    %v221 = vsel %vm219, 0.0, 0
    %223 = vmatprep.subr.mxu0 %v38
    %224 = vmatpush1.msra.mxu0 %v37
    %225 = vmatprep.subr.mxu0 %v40
    %226 = vmatpush1.msra.mxu0 %v39
    %227 = vmatprep.subr.mxu0 %v42
    %228 = vmatpush1.msra.mxu0 %v41
    %229 = vmatprep.subr.mxu0 %v44
    %230 = vmatpush1.msra.mxu0 %v43
    %231 = vmatprep.subr.mxu0 %v46
    %232 = vmatpush1.msra.mxu0 %v45
    %233 = vmatprep.subr.mxu0 %v48
    %234 = vmatpush1.msra.mxu0 %v47
    %235 = vmatprep.subr.mxu0 %v50
    %236 = vmatpush1.msra.mxu0 %v49
    %237 = vmatprep.subr.mxu0 %v52
    %238 = vmatpush1.msra.mxu0 %v51
    %239 = vmatprep.subr.mxu0 0.0
    %240 = vmatpush1.msra.mxu0 0.0
    %241 = vmatprep.subr.mxu0 0.0
    %242 = vmatpush1.msra.mxu0 0.0
    %243 = vmatprep.subr.mxu0 0.0
    %244 = vmatpush1.msra.mxu0 0.0
    %245 = vmatprep.subr.mxu0 0.0
    %246 = vmatpush1.msra.mxu0 0.0
    %247 = vmatprep.subr.mxu0 0.0
    %248 = vmatpush1.msra.mxu0 0.0
    %249 = vmatprep.subr.mxu0 0.0
    %250 = vmatpush1.msra.mxu0 0.0
    %251 = vmatprep.subr.mxu0 0.0
    %252 = vmatpush1.msra.mxu0 0.0
    %253 = vmatprep.subr.mxu0 0.0
    %254 = vmatpush1.msra.mxu0 0.0
    %255 = vmatprep.subr.mxu0 0.0
    %256 = vmatpush1.msra.mxu0 0.0
    %257 = vmatprep.subr.mxu0 0.0
    %258 = vmatpush1.msra.mxu0 0.0
    %259 = vmatprep.subr.mxu0 0.0
    %260 = vmatpush1.msra.mxu0 0.0
    %261 = vmatprep.subr.mxu0 0.0
    %262 = vmatpush1.msra.mxu0 0.0
    %263 = vmatprep.subr.mxu0 0.0
    %264 = vmatpush1.msra.mxu0 0.0
    %265 = vmatprep.subr.mxu0 0.0
    %266 = vmatpush1.msra.mxu0 0.0
    %267 = vmatprep.subr.mxu0 0.0
    %268 = vmatpush1.msra.mxu0 0.0
    %269 = vmatprep.subr.mxu0 0.0
    %270 = vmatpush1.msra.mxu0 0.0
    %271 = vmatprep.subr.mxu0 0.0
    %272 = vmatpush1.msra.mxu0 0.0
    %273 = vmatprep.subr.mxu0 0.0
    %274 = vmatpush1.msra.mxu0 0.0
    %275 = vmatprep.subr.mxu0 0.0
    %276 = vmatpush1.msra.mxu0 0.0
    %277 = vmatprep.subr.mxu0 0.0
    %278 = vmatpush1.msra.mxu0 0.0
    %279 = vmatprep.subr.mxu0 0.0
    %280 = vmatpush1.msra.mxu0 0.0
    %281 = vmatprep.subr.mxu0 0.0
    %282 = vmatpush1.msra.mxu0 0.0
    %283 = vmatprep.subr.mxu0 0.0
    %284 = vmatpush1.msra.mxu0 0.0
    %285 = vmatprep.subr.mxu0 0.0
    %286 = vmatpush1.msra.mxu0 0.0
    %287 = vmatprep.mubr.f32.mxu0 0.0
    %288 = vmatmul.mubr.f32.gmra.mrb[0].mxu0 %v221
    %v289 = vpop.f32.mrb[0].mxu0
    %v290 = vadd.f32 0.0, %v289
    %v291 = vpop.f32.mrb[0].mxu0
    %v292 = vadd.f32 0.0, %v291
    %293 = vdwg.mxu0
    %v294 = vadd.f32 %v173, %v290
    %v295 = vadd.f32 %v175, %v292
    %v296 = vxor.u32 %v294, 2147483648
    %v297 = vxor.u32 %v295, 2147483648
    %v298 = vmul.f32 %v296, 1.442695
    %v299 = vpow.pop %v298
    %v300 = vmul.f32 %v297, 1.442695
    %v301 = vpow.pop %v300
    %v302 = vadd.f32 %v299, 1.0
    %v303 = vadd.f32 %v301, 1.0
    %v304 = vrcp.pop %v302
    %v305 = vmul.f32 1.0, %v304
    %v306 = vrcp.pop %v303
    %v307 = vmul.f32 1.0, %v306
    %v308 = vmul.f32 %v307, 2.0
    %v309 = vsub.f32 %v308, 1.0
    %v310 = vmul.f32 %v305, 0.0
    %v311 = vmul.f32 %v305, %v309
    %313 = vrot.lane.b32.xlu0 %v311, 64
    %v314 = vpop.permute.xlu0 %313
    %v316 = vadd.f32 %v310, %v314
    %v317 = vtanh.pop %v316
    %v318 = vmul.f32 %v307, %v317
    %320 = vrot.lane.b32.xlu0 %v318, 64
    %v321 = vpop.permute.xlu0 %320
    %v322 = vsel %vm219, %v321, 0
    %324 = vmatprep.subr.mxu0 %v38
    %325 = vmatpush1.msra.mxu0 %v37
    %326 = vmatprep.subr.mxu0 %v40
    %327 = vmatpush1.msra.mxu0 %v39
    %328 = vmatprep.subr.mxu0 %v42
    %329 = vmatpush1.msra.mxu0 %v41
    %330 = vmatprep.subr.mxu0 %v44
    %331 = vmatpush1.msra.mxu0 %v43
    %332 = vmatprep.subr.mxu0 %v46
    %333 = vmatpush1.msra.mxu0 %v45
    %334 = vmatprep.subr.mxu0 %v48
    %335 = vmatpush1.msra.mxu0 %v47
    %336 = vmatprep.subr.mxu0 %v50
    %337 = vmatpush1.msra.mxu0 %v49
    %338 = vmatprep.subr.mxu0 %v52
    %339 = vmatpush1.msra.mxu0 %v51
    %340 = vmatprep.subr.mxu0 0.0
    %341 = vmatpush1.msra.mxu0 0.0
    %342 = vmatprep.subr.mxu0 0.0
    %343 = vmatpush1.msra.mxu0 0.0
    %344 = vmatprep.subr.mxu0 0.0
    %345 = vmatpush1.msra.mxu0 0.0
    %346 = vmatprep.subr.mxu0 0.0
    %347 = vmatpush1.msra.mxu0 0.0
    %348 = vmatprep.subr.mxu0 0.0
    %349 = vmatpush1.msra.mxu0 0.0
    %350 = vmatprep.subr.mxu0 0.0
    %351 = vmatpush1.msra.mxu0 0.0
    %352 = vmatprep.subr.mxu0 0.0
    %353 = vmatpush1.msra.mxu0 0.0
    %354 = vmatprep.subr.mxu0 0.0
    %355 = vmatpush1.msra.mxu0 0.0
    %356 = vmatprep.subr.mxu0 0.0
    %357 = vmatpush1.msra.mxu0 0.0
    %358 = vmatprep.subr.mxu0 0.0
    %359 = vmatpush1.msra.mxu0 0.0
    %360 = vmatprep.subr.mxu0 0.0
    %361 = vmatpush1.msra.mxu0 0.0
    %362 = vmatprep.subr.mxu0 0.0
    %363 = vmatpush1.msra.mxu0 0.0
    %364 = vmatprep.subr.mxu0 0.0
    %365 = vmatpush1.msra.mxu0 0.0
    %366 = vmatprep.subr.mxu0 0.0
    %367 = vmatpush1.msra.mxu0 0.0
    %368 = vmatprep.subr.mxu0 0.0
    %369 = vmatpush1.msra.mxu0 0.0
    %370 = vmatprep.subr.mxu0 0.0
    %371 = vmatpush1.msra.mxu0 0.0
    %372 = vmatprep.subr.mxu0 0.0
    %373 = vmatpush1.msra.mxu0 0.0
    %374 = vmatprep.subr.mxu0 0.0
    %375 = vmatpush1.msra.mxu0 0.0
    %376 = vmatprep.subr.mxu0 0.0
    %377 = vmatpush1.msra.mxu0 0.0
    %378 = vmatprep.subr.mxu0 0.0
    %379 = vmatpush1.msra.mxu0 0.0
    %380 = vmatprep.subr.mxu0 0.0
    %381 = vmatpush1.msra.mxu0 0.0
    %382 = vmatprep.subr.mxu0 0.0
    %383 = vmatpush1.msra.mxu0 0.0
    %384 = vmatprep.subr.mxu0 0.0
    %385 = vmatpush1.msra.mxu0 0.0
    %386 = vmatprep.subr.mxu0 0.0
    %387 = vmatpush1.msra.mxu0 0.0
    %388 = vmatprep.mubr.f32.mxu0 0.0
    %389 = vmatmul.mubr.f32.gmra.mrb[0].mxu0 %v322
    %v390 = vpop.f32.mrb[0].mxu0
    %v391 = vadd.f32 0.0, %v390
    %v392 = vpop.f32.mrb[0].mxu0
    %v393 = vadd.f32 0.0, %v392
    %394 = vdwg.mxu0
    %v395 = vadd.f32 %v179, %v391
    %v396 = vadd.f32 %v181, %v393
    %v397 = vxor.u32 %v395, 2147483648
    %v398 = vxor.u32 %v396, 2147483648
    %v399 = vmul.f32 %v397, 1.442695
    %v400 = vpow.pop %v399
    %v401 = vmul.f32 %v398, 1.442695
    %v402 = vpow.pop %v401
    %v403 = vadd.f32 %v400, 1.0
    %v404 = vadd.f32 %v402, 1.0
    %v405 = vrcp.pop %v403
    %v406 = vmul.f32 1.0, %v405
    %v407 = vrcp.pop %v404
    %v408 = vmul.f32 1.0, %v407
    %v409 = vmul.f32 %v408, 2.0
    %v410 = vsub.f32 %v409, 1.0
    %v411 = vmul.f32 %v406, %v316
    %v412 = vmul.f32 %v406, %v410
    %414 = vrot.lane.b32.xlu0 %v412, 64
    %v415 = vpop.permute.xlu0 %414
    %v417 = vadd.f32 %v411, %v415
    %v418 = vtanh.pop %v417
    %v419 = vmul.f32 %v408, %v418
    %421 = vrot.lane.b32.xlu0 %v419, 64
    %v422 = vpop.permute.xlu0 %421
    %v423 = vsel %vm219, %v422, 0
    %425 = vmatprep.subr.mxu0 %v38
    %426 = vmatpush1.msra.mxu0 %v37
    %427 = vmatprep.subr.mxu0 %v40
    %428 = vmatpush1.msra.mxu0 %v39
    %429 = vmatprep.subr.mxu0 %v42
    %430 = vmatpush1.msra.mxu0 %v41
    %431 = vmatprep.subr.mxu0 %v44
    %432 = vmatpush1.msra.mxu0 %v43
    %433 = vmatprep.subr.mxu0 %v46
    %434 = vmatpush1.msra.mxu0 %v45
    %435 = vmatprep.subr.mxu0 %v48
    %436 = vmatpush1.msra.mxu0 %v47
    %437 = vmatprep.subr.mxu0 %v50
    %438 = vmatpush1.msra.mxu0 %v49
    %439 = vmatprep.subr.mxu0 %v52
    %440 = vmatpush1.msra.mxu0 %v51
    %441 = vmatprep.subr.mxu0 0.0
    %442 = vmatpush1.msra.mxu0 0.0
    %443 = vmatprep.subr.mxu0 0.0
    %444 = vmatpush1.msra.mxu0 0.0
    %445 = vmatprep.subr.mxu0 0.0
    %446 = vmatpush1.msra.mxu0 0.0
    %447 = vmatprep.subr.mxu0 0.0
    %448 = vmatpush1.msra.mxu0 0.0
    %449 = vmatprep.subr.mxu0 0.0
    %450 = vmatpush1.msra.mxu0 0.0
    %451 = vmatprep.subr.mxu0 0.0
    %452 = vmatpush1.msra.mxu0 0.0
    %453 = vmatprep.subr.mxu0 0.0
    %454 = vmatpush1.msra.mxu0 0.0
    %455 = vmatprep.subr.mxu0 0.0
    %456 = vmatpush1.msra.mxu0 0.0
    %457 = vmatprep.subr.mxu0 0.0
    %458 = vmatpush1.msra.mxu0 0.0
    %459 = vmatprep.subr.mxu0 0.0
    %460 = vmatpush1.msra.mxu0 0.0
    %461 = vmatprep.subr.mxu0 0.0
    %462 = vmatpush1.msra.mxu0 0.0
    %463 = vmatprep.subr.mxu0 0.0
    %464 = vmatpush1.msra.mxu0 0.0
    %465 = vmatprep.subr.mxu0 0.0
    %466 = vmatpush1.msra.mxu0 0.0
    %467 = vmatprep.subr.mxu0 0.0
    %468 = vmatpush1.msra.mxu0 0.0
    %469 = vmatprep.subr.mxu0 0.0
    %470 = vmatpush1.msra.mxu0 0.0
    %471 = vmatprep.subr.mxu0 0.0
    %472 = vmatpush1.msra.mxu0 0.0
    %473 = vmatprep.subr.mxu0 0.0
    %474 = vmatpush1.msra.mxu0 0.0
    %475 = vmatprep.subr.mxu0 0.0
    %476 = vmatpush1.msra.mxu0 0.0
    %477 = vmatprep.subr.mxu0 0.0
    %478 = vmatpush1.msra.mxu0 0.0
    %479 = vmatprep.subr.mxu0 0.0
    %480 = vmatpush1.msra.mxu0 0.0
    %481 = vmatprep.subr.mxu0 0.0
    %482 = vmatpush1.msra.mxu0 0.0
    %483 = vmatprep.subr.mxu0 0.0
    %484 = vmatpush1.msra.mxu0 0.0
    %485 = vmatprep.subr.mxu0 0.0
    %486 = vmatpush1.msra.mxu0 0.0
    %487 = vmatprep.subr.mxu0 0.0
    %488 = vmatpush1.msra.mxu0 0.0
    %489 = vmatprep.mubr.f32.mxu0 0.0
    %490 = vmatmul.mubr.f32.gmra.mrb[0].mxu0 %v423
    %v491 = vpop.f32.mrb[0].mxu0
    %v492 = vadd.f32 0.0, %v491
    %v493 = vpop.f32.mrb[0].mxu0
    %v494 = vadd.f32 0.0, %v493
    %495 = vdwg.mxu0
    %v496 = vadd.f32 %v185, %v492
    %v497 = vadd.f32 %v187, %v494
    %v498 = vxor.u32 %v496, 2147483648
    %v499 = vxor.u32 %v497, 2147483648
    %v500 = vmul.f32 %v498, 1.442695
    %v501 = vpow.pop %v500
    %v502 = vmul.f32 %v499, 1.442695
    %v503 = vpow.pop %v502
    %v504 = vadd.f32 %v501, 1.0
    %v505 = vadd.f32 %v503, 1.0
    %v506 = vrcp.pop %v504
    %v507 = vmul.f32 1.0, %v506
    %v508 = vrcp.pop %v505
    %v509 = vmul.f32 1.0, %v508
    %v510 = vmul.f32 %v509, 2.0
    %v511 = vsub.f32 %v510, 1.0
    %v512 = vmul.f32 %v507, %v417
    %v513 = vmul.f32 %v507, %v511
    %515 = vrot.lane.b32.xlu0 %v513, 64
    %v516 = vpop.permute.xlu0 %515
    %v518 = vadd.f32 %v512, %v516
    %v519 = vtanh.pop %v518
    %v520 = vmul.f32 %v509, %v519
    %522 = vrot.lane.b32.xlu0 %v520, 64
    %v523 = vpop.permute.xlu0 %522
    %v524 = vsel %vm219, %v523, 0
    %526 = vmatprep.subr.mxu0 %v38
    %527 = vmatpush1.msra.mxu0 %v37
    %528 = vmatprep.subr.mxu0 %v40
    %529 = vmatpush1.msra.mxu0 %v39
    %530 = vmatprep.subr.mxu0 %v42
    %531 = vmatpush1.msra.mxu0 %v41
    %532 = vmatprep.subr.mxu0 %v44
    %533 = vmatpush1.msra.mxu0 %v43
    %534 = vmatprep.subr.mxu0 %v46
    %535 = vmatpush1.msra.mxu0 %v45
    %536 = vmatprep.subr.mxu0 %v48
    %537 = vmatpush1.msra.mxu0 %v47
    %538 = vmatprep.subr.mxu0 %v50
    %539 = vmatpush1.msra.mxu0 %v49
    %540 = vmatprep.subr.mxu0 %v52
    %541 = vmatpush1.msra.mxu0 %v51
    %542 = vmatprep.subr.mxu0 0.0
    %543 = vmatpush1.msra.mxu0 0.0
    %544 = vmatprep.subr.mxu0 0.0
    %545 = vmatpush1.msra.mxu0 0.0
    %546 = vmatprep.subr.mxu0 0.0
    %547 = vmatpush1.msra.mxu0 0.0
    %548 = vmatprep.subr.mxu0 0.0
    %549 = vmatpush1.msra.mxu0 0.0
    %550 = vmatprep.subr.mxu0 0.0
    %551 = vmatpush1.msra.mxu0 0.0
    %552 = vmatprep.subr.mxu0 0.0
    %553 = vmatpush1.msra.mxu0 0.0
    %554 = vmatprep.subr.mxu0 0.0
    %555 = vmatpush1.msra.mxu0 0.0
    %556 = vmatprep.subr.mxu0 0.0
    %557 = vmatpush1.msra.mxu0 0.0
    %558 = vmatprep.subr.mxu0 0.0
    %559 = vmatpush1.msra.mxu0 0.0
    %560 = vmatprep.subr.mxu0 0.0
    %561 = vmatpush1.msra.mxu0 0.0
    %562 = vmatprep.subr.mxu0 0.0
    %563 = vmatpush1.msra.mxu0 0.0
    %564 = vmatprep.subr.mxu0 0.0
    %565 = vmatpush1.msra.mxu0 0.0
    %566 = vmatprep.subr.mxu0 0.0
    %567 = vmatpush1.msra.mxu0 0.0
    %568 = vmatprep.subr.mxu0 0.0
    %569 = vmatpush1.msra.mxu0 0.0
    %570 = vmatprep.subr.mxu0 0.0
    %571 = vmatpush1.msra.mxu0 0.0
    %572 = vmatprep.subr.mxu0 0.0
    %573 = vmatpush1.msra.mxu0 0.0
    %574 = vmatprep.subr.mxu0 0.0
    %575 = vmatpush1.msra.mxu0 0.0
    %576 = vmatprep.subr.mxu0 0.0
    %577 = vmatpush1.msra.mxu0 0.0
    %578 = vmatprep.subr.mxu0 0.0
    %579 = vmatpush1.msra.mxu0 0.0
    %580 = vmatprep.subr.mxu0 0.0
    %581 = vmatpush1.msra.mxu0 0.0
    %582 = vmatprep.subr.mxu0 0.0
    %583 = vmatpush1.msra.mxu0 0.0
    %584 = vmatprep.subr.mxu0 0.0
    %585 = vmatpush1.msra.mxu0 0.0
    %586 = vmatprep.subr.mxu0 0.0
    %587 = vmatpush1.msra.mxu0 0.0
    %588 = vmatprep.subr.mxu0 0.0
    %589 = vmatpush1.msra.mxu0 0.0
    %590 = vmatprep.mubr.f32.mxu0 0.0
    %591 = vmatmul.mubr.f32.gmra.mrb[0].mxu0 %v524
    %v592 = vpop.f32.mrb[0].mxu0
    %v593 = vadd.f32 0.0, %v592
    %v594 = vpop.f32.mrb[0].mxu0
    %v595 = vadd.f32 0.0, %v594
    %596 = vdwg.mxu0
    %v597 = vadd.f32 %v191, %v593
    %v598 = vadd.f32 %v193, %v595
    %v599 = vxor.u32 %v597, 2147483648
    %v600 = vxor.u32 %v598, 2147483648
    %v601 = vmul.f32 %v599, 1.442695
    %v602 = vpow.pop %v601
    %v603 = vmul.f32 %v600, 1.442695
    %v604 = vpow.pop %v603
    %v605 = vadd.f32 %v602, 1.0
    %v606 = vadd.f32 %v604, 1.0
    %v607 = vrcp.pop %v605
    %v608 = vmul.f32 1.0, %v607
    %v609 = vrcp.pop %v606
    %v610 = vmul.f32 1.0, %v609
    %v611 = vmul.f32 %v610, 2.0
    %v612 = vsub.f32 %v611, 1.0
    %v613 = vmul.f32 %v608, %v518
    %v614 = vmul.f32 %v608, %v612
    %616 = vrot.lane.b32.xlu0 %v614, 64
    %v617 = vpop.permute.xlu0 %616
    %v619 = vadd.f32 %v613, %v617
    %v620 = vtanh.pop %v619
    %v621 = vmul.f32 %v610, %v620
    %623 = vrot.lane.b32.xlu0 %v621, 64
    %v624 = vpop.permute.xlu0 %623
    %v625 = vsel %vm219, %v624, 0
    %627 = vmatprep.subr.mxu0 %v38
    %628 = vmatpush1.msra.mxu0 %v37
    %629 = vmatprep.subr.mxu0 %v40
    %630 = vmatpush1.msra.mxu0 %v39
    %631 = vmatprep.subr.mxu0 %v42
    %632 = vmatpush1.msra.mxu0 %v41
    %633 = vmatprep.subr.mxu0 %v44
    %634 = vmatpush1.msra.mxu0 %v43
    %635 = vmatprep.subr.mxu0 %v46
    %636 = vmatpush1.msra.mxu0 %v45
    %637 = vmatprep.subr.mxu0 %v48
    %638 = vmatpush1.msra.mxu0 %v47
    %639 = vmatprep.subr.mxu0 %v50
    %640 = vmatpush1.msra.mxu0 %v49
    %641 = vmatprep.subr.mxu0 %v52
    %642 = vmatpush1.msra.mxu0 %v51
    %643 = vmatprep.subr.mxu0 0.0
    %644 = vmatpush1.msra.mxu0 0.0
    %645 = vmatprep.subr.mxu0 0.0
    %646 = vmatpush1.msra.mxu0 0.0
    %647 = vmatprep.subr.mxu0 0.0
    %648 = vmatpush1.msra.mxu0 0.0
    %649 = vmatprep.subr.mxu0 0.0
    %650 = vmatpush1.msra.mxu0 0.0
    %651 = vmatprep.subr.mxu0 0.0
    %652 = vmatpush1.msra.mxu0 0.0
    %653 = vmatprep.subr.mxu0 0.0
    %654 = vmatpush1.msra.mxu0 0.0
    %655 = vmatprep.subr.mxu0 0.0
    %656 = vmatpush1.msra.mxu0 0.0
    %657 = vmatprep.subr.mxu0 0.0
    %658 = vmatpush1.msra.mxu0 0.0
    %659 = vmatprep.subr.mxu0 0.0
    %660 = vmatpush1.msra.mxu0 0.0
    %661 = vmatprep.subr.mxu0 0.0
    %662 = vmatpush1.msra.mxu0 0.0
    %663 = vmatprep.subr.mxu0 0.0
    %664 = vmatpush1.msra.mxu0 0.0
    %665 = vmatprep.subr.mxu0 0.0
    %666 = vmatpush1.msra.mxu0 0.0
    %667 = vmatprep.subr.mxu0 0.0
    %668 = vmatpush1.msra.mxu0 0.0
    %669 = vmatprep.subr.mxu0 0.0
    %670 = vmatpush1.msra.mxu0 0.0
    %671 = vmatprep.subr.mxu0 0.0
    %672 = vmatpush1.msra.mxu0 0.0
    %673 = vmatprep.subr.mxu0 0.0
    %674 = vmatpush1.msra.mxu0 0.0
    %675 = vmatprep.subr.mxu0 0.0
    %676 = vmatpush1.msra.mxu0 0.0
    %677 = vmatprep.subr.mxu0 0.0
    %678 = vmatpush1.msra.mxu0 0.0
    %679 = vmatprep.subr.mxu0 0.0
    %680 = vmatpush1.msra.mxu0 0.0
    %681 = vmatprep.subr.mxu0 0.0
    %682 = vmatpush1.msra.mxu0 0.0
    %683 = vmatprep.subr.mxu0 0.0
    %684 = vmatpush1.msra.mxu0 0.0
    %685 = vmatprep.subr.mxu0 0.0
    %686 = vmatpush1.msra.mxu0 0.0
    %687 = vmatprep.subr.mxu0 0.0
    %688 = vmatpush1.msra.mxu0 0.0
    %689 = vmatprep.subr.mxu0 0.0
    %690 = vmatpush1.msra.mxu0 0.0
    %691 = vmatprep.mubr.f32.mxu0 0.0
    %692 = vmatmul.mubr.f32.gmra.mrb[0].mxu0 %v625
    %v693 = vpop.f32.mrb[0].mxu0
    %v694 = vadd.f32 0.0, %v693
    %v695 = vpop.f32.mrb[0].mxu0
    %v696 = vadd.f32 0.0, %v695
    %697 = vdwg.mxu0
    %v698 = vadd.f32 %v197, %v694
    %v699 = vadd.f32 %v199, %v696
    %v700 = vxor.u32 %v698, 2147483648
    %v701 = vxor.u32 %v699, 2147483648
    %v702 = vmul.f32 %v700, 1.442695
    %v703 = vpow.pop %v702
    %v704 = vmul.f32 %v701, 1.442695
    %v705 = vpow.pop %v704
    %v706 = vadd.f32 %v703, 1.0
    %v707 = vadd.f32 %v705, 1.0
    %v708 = vrcp.pop %v706
    %v709 = vmul.f32 1.0, %v708
    %v710 = vrcp.pop %v707
    %v711 = vmul.f32 1.0, %v710
    %v712 = vmul.f32 %v711, 2.0
    %v713 = vsub.f32 %v712, 1.0
    %v714 = vmul.f32 %v709, %v619
    %v715 = vmul.f32 %v709, %v713
    %717 = vrot.lane.b32.xlu0 %v715, 64
    %v718 = vpop.permute.xlu0 %717
    %v720 = vadd.f32 %v714, %v718
    %v721 = vtanh.pop %v720
    %v722 = vmul.f32 %v711, %v721
    %724 = vrot.lane.b32.xlu0 %v722, 64
    %v725 = vpop.permute.xlu0 %724
    %v726 = vsel %vm219, %v725, 0
    %728 = vmatprep.subr.mxu0 %v38
    %729 = vmatpush1.msra.mxu0 %v37
    %730 = vmatprep.subr.mxu0 %v40
    %731 = vmatpush1.msra.mxu0 %v39
    %732 = vmatprep.subr.mxu0 %v42
    %733 = vmatpush1.msra.mxu0 %v41
    %734 = vmatprep.subr.mxu0 %v44
    %735 = vmatpush1.msra.mxu0 %v43
    %736 = vmatprep.subr.mxu0 %v46
    %737 = vmatpush1.msra.mxu0 %v45
    %738 = vmatprep.subr.mxu0 %v48
    %739 = vmatpush1.msra.mxu0 %v47
    %740 = vmatprep.subr.mxu0 %v50
    %741 = vmatpush1.msra.mxu0 %v49
    %742 = vmatprep.subr.mxu0 %v52
    %743 = vmatpush1.msra.mxu0 %v51
    %744 = vmatprep.subr.mxu0 0.0
    %745 = vmatpush1.msra.mxu0 0.0
    %746 = vmatprep.subr.mxu0 0.0
    %747 = vmatpush1.msra.mxu0 0.0
    %748 = vmatprep.subr.mxu0 0.0
    %749 = vmatpush1.msra.mxu0 0.0
    %750 = vmatprep.subr.mxu0 0.0
    %751 = vmatpush1.msra.mxu0 0.0
    %752 = vmatprep.subr.mxu0 0.0
    %753 = vmatpush1.msra.mxu0 0.0
    %754 = vmatprep.subr.mxu0 0.0
    %755 = vmatpush1.msra.mxu0 0.0
    %756 = vmatprep.subr.mxu0 0.0
    %757 = vmatpush1.msra.mxu0 0.0
    %758 = vmatprep.subr.mxu0 0.0
    %759 = vmatpush1.msra.mxu0 0.0
    %760 = vmatprep.subr.mxu0 0.0
    %761 = vmatpush1.msra.mxu0 0.0
    %762 = vmatprep.subr.mxu0 0.0
    %763 = vmatpush1.msra.mxu0 0.0
    %764 = vmatprep.subr.mxu0 0.0
    %765 = vmatpush1.msra.mxu0 0.0
    %766 = vmatprep.subr.mxu0 0.0
    %767 = vmatpush1.msra.mxu0 0.0
    %768 = vmatprep.subr.mxu0 0.0
    %769 = vmatpush1.msra.mxu0 0.0
    %770 = vmatprep.subr.mxu0 0.0
    %771 = vmatpush1.msra.mxu0 0.0
    %772 = vmatprep.subr.mxu0 0.0
    %773 = vmatpush1.msra.mxu0 0.0
    %774 = vmatprep.subr.mxu0 0.0
    %775 = vmatpush1.msra.mxu0 0.0
    %776 = vmatprep.subr.mxu0 0.0
    %777 = vmatpush1.msra.mxu0 0.0
    %778 = vmatprep.subr.mxu0 0.0
    %779 = vmatpush1.msra.mxu0 0.0
    %780 = vmatprep.subr.mxu0 0.0
    %781 = vmatpush1.msra.mxu0 0.0
    %782 = vmatprep.subr.mxu0 0.0
    %783 = vmatpush1.msra.mxu0 0.0
    %784 = vmatprep.subr.mxu0 0.0
    %785 = vmatpush1.msra.mxu0 0.0
    %786 = vmatprep.subr.mxu0 0.0
    %787 = vmatpush1.msra.mxu0 0.0
    %788 = vmatprep.subr.mxu0 0.0
    %789 = vmatpush1.msra.mxu0 0.0
    %790 = vmatprep.subr.mxu0 0.0
    %791 = vmatpush1.msra.mxu0 0.0
    %792 = vmatprep.mubr.f32.mxu0 0.0
    %793 = vmatmul.mubr.f32.gmra.mrb[0].mxu0 %v726
    %v794 = vpop.f32.mrb[0].mxu0
    %v795 = vadd.f32 0.0, %v794
    %v796 = vpop.f32.mrb[0].mxu0
    %v797 = vadd.f32 0.0, %v796
    %798 = vdwg.mxu0
    %v799 = vadd.f32 %v203, %v795
    %v800 = vadd.f32 %v205, %v797
    %v801 = vxor.u32 %v799, 2147483648
    %v802 = vxor.u32 %v800, 2147483648
    %v803 = vmul.f32 %v801, 1.442695
    %v804 = vpow.pop %v803
    %v805 = vmul.f32 %v802, 1.442695
    %v806 = vpow.pop %v805
    %v807 = vadd.f32 %v804, 1.0
    %v808 = vadd.f32 %v806, 1.0
    %v809 = vrcp.pop %v807
    %v810 = vmul.f32 1.0, %v809
    %v811 = vrcp.pop %v808
    %v812 = vmul.f32 1.0, %v811
    %v813 = vmul.f32 %v812, 2.0
    %v814 = vsub.f32 %v813, 1.0
    %v815 = vmul.f32 %v810, %v720
    %v816 = vmul.f32 %v810, %v814
    %818 = vrot.lane.b32.xlu0 %v816, 64
    %v819 = vpop.permute.xlu0 %818
    %v821 = vadd.f32 %v815, %v819
    %v822 = vtanh.pop %v821
    %v823 = vmul.f32 %v812, %v822
    %825 = vrot.lane.b32.xlu0 %v823, 64
    %v826 = vpop.permute.xlu0 %825
    %v827 = vsel %vm219, %v826, 0
    %829 = vmatprep.subr.mxu0 %v38
    %830 = vmatpush1.msra.mxu0 %v37
    %831 = vmatprep.subr.mxu0 %v40
    %832 = vmatpush1.msra.mxu0 %v39
    %833 = vmatprep.subr.mxu0 %v42
    %834 = vmatpush1.msra.mxu0 %v41
    %835 = vmatprep.subr.mxu0 %v44
    %836 = vmatpush1.msra.mxu0 %v43
    %837 = vmatprep.subr.mxu0 %v46
    %838 = vmatpush1.msra.mxu0 %v45
    %839 = vmatprep.subr.mxu0 %v48
    %840 = vmatpush1.msra.mxu0 %v47
    %841 = vmatprep.subr.mxu0 %v50
    %842 = vmatpush1.msra.mxu0 %v49
    %843 = vmatprep.subr.mxu0 %v52
    %844 = vmatpush1.msra.mxu0 %v51
    %845 = vmatprep.subr.mxu0 0.0
    %846 = vmatpush1.msra.mxu0 0.0
    %847 = vmatprep.subr.mxu0 0.0
    %848 = vmatpush1.msra.mxu0 0.0
    %849 = vmatprep.subr.mxu0 0.0
    %850 = vmatpush1.msra.mxu0 0.0
    %851 = vmatprep.subr.mxu0 0.0
    %852 = vmatpush1.msra.mxu0 0.0
    %853 = vmatprep.subr.mxu0 0.0
    %854 = vmatpush1.msra.mxu0 0.0
    %855 = vmatprep.subr.mxu0 0.0
    %856 = vmatpush1.msra.mxu0 0.0
    %857 = vmatprep.subr.mxu0 0.0
    %858 = vmatpush1.msra.mxu0 0.0
    %859 = vmatprep.subr.mxu0 0.0
    %860 = vmatpush1.msra.mxu0 0.0
    %861 = vmatprep.subr.mxu0 0.0
    %862 = vmatpush1.msra.mxu0 0.0
    %863 = vmatprep.subr.mxu0 0.0
    %864 = vmatpush1.msra.mxu0 0.0
    %865 = vmatprep.subr.mxu0 0.0
    %866 = vmatpush1.msra.mxu0 0.0
    %867 = vmatprep.subr.mxu0 0.0
    %868 = vmatpush1.msra.mxu0 0.0
    %869 = vmatprep.subr.mxu0 0.0
    %870 = vmatpush1.msra.mxu0 0.0
    %871 = vmatprep.subr.mxu0 0.0
    %872 = vmatpush1.msra.mxu0 0.0
    %873 = vmatprep.subr.mxu0 0.0
    %874 = vmatpush1.msra.mxu0 0.0
    %875 = vmatprep.subr.mxu0 0.0
    %876 = vmatpush1.msra.mxu0 0.0
    %877 = vmatprep.subr.mxu0 0.0
    %878 = vmatpush1.msra.mxu0 0.0
    %879 = vmatprep.subr.mxu0 0.0
    %880 = vmatpush1.msra.mxu0 0.0
    %881 = vmatprep.subr.mxu0 0.0
    %882 = vmatpush1.msra.mxu0 0.0
    %883 = vmatprep.subr.mxu0 0.0
    %884 = vmatpush1.msra.mxu0 0.0
    %885 = vmatprep.subr.mxu0 0.0
    %886 = vmatpush1.msra.mxu0 0.0
    %887 = vmatprep.subr.mxu0 0.0
    %888 = vmatpush1.msra.mxu0 0.0
    %889 = vmatprep.subr.mxu0 0.0
    %890 = vmatpush1.msra.mxu0 0.0
    %891 = vmatprep.subr.mxu0 0.0
    %892 = vmatpush1.msra.mxu0 0.0
    %893 = vmatprep.mubr.f32.mxu0 0.0
    %894 = vmatmul.mubr.f32.gmra.mrb[0].mxu0 %v827
    %v895 = vpop.f32.mrb[0].mxu0
    %v896 = vadd.f32 0.0, %v895
    %v897 = vpop.f32.mrb[0].mxu0
    %v898 = vadd.f32 0.0, %v897
    %899 = vdwg.mxu0
    %v900 = vadd.f32 %v209, %v896
    %v901 = vadd.f32 %v211, %v898
    %v902 = vxor.u32 %v900, 2147483648
    %v903 = vxor.u32 %v901, 2147483648
    %v904 = vmul.f32 %v902, 1.442695
    %v905 = vpow.pop %v904
    %v906 = vmul.f32 %v903, 1.442695
    %v907 = vpow.pop %v906
    %v908 = vadd.f32 %v905, 1.0
    %v909 = vadd.f32 %v907, 1.0
    %v910 = vrcp.pop %v908
    %v911 = vmul.f32 1.0, %v910
    %v912 = vrcp.pop %v909
    %v913 = vmul.f32 1.0, %v912
    %v914 = vmul.f32 %v913, 2.0
    %v915 = vsub.f32 %v914, 1.0
    %v916 = vmul.f32 %v911, %v821
    %v917 = vmul.f32 %v911, %v915
    %919 = vrot.lane.b32.xlu0 %v917, 64
    %v920 = vpop.permute.xlu0 %919
    %v922 = vadd.f32 %v916, %v920
    %v923 = vtanh.pop %v922
    %v924 = vmul.f32 %v913, %v923
    %926 = vrot.lane.b32.xlu0 %v924, 64
    %v927 = vpop.permute.xlu0 %926
    %v928 = vsel %vm219, %v927, 0
    %930 = vmatprep.subr.mxu0 %v38
    %931 = vmatpush1.msra.mxu0 %v37
    %932 = vmatprep.subr.mxu0 %v40
    %933 = vmatpush1.msra.mxu0 %v39
    %934 = vmatprep.subr.mxu0 %v42
    %935 = vmatpush1.msra.mxu0 %v41
    %936 = vmatprep.subr.mxu0 %v44
    %937 = vmatpush1.msra.mxu0 %v43
    %938 = vmatprep.subr.mxu0 %v46
    %939 = vmatpush1.msra.mxu0 %v45
    %940 = vmatprep.subr.mxu0 %v48
    %941 = vmatpush1.msra.mxu0 %v47
    %942 = vmatprep.subr.mxu0 %v50
    %943 = vmatpush1.msra.mxu0 %v49
    %944 = vmatprep.subr.mxu0 %v52
    %945 = vmatpush1.msra.mxu0 %v51
    %946 = vmatprep.subr.mxu0 0.0
    %947 = vmatpush1.msra.mxu0 0.0
    %948 = vmatprep.subr.mxu0 0.0
    %949 = vmatpush1.msra.mxu0 0.0
    %950 = vmatprep.subr.mxu0 0.0
    %951 = vmatpush1.msra.mxu0 0.0
    %952 = vmatprep.subr.mxu0 0.0
    %953 = vmatpush1.msra.mxu0 0.0
    %954 = vmatprep.subr.mxu0 0.0
    %955 = vmatpush1.msra.mxu0 0.0
    %956 = vmatprep.subr.mxu0 0.0
    %957 = vmatpush1.msra.mxu0 0.0
    %958 = vmatprep.subr.mxu0 0.0
    %959 = vmatpush1.msra.mxu0 0.0
    %960 = vmatprep.subr.mxu0 0.0
    %961 = vmatpush1.msra.mxu0 0.0
    %962 = vmatprep.subr.mxu0 0.0
    %963 = vmatpush1.msra.mxu0 0.0
    %964 = vmatprep.subr.mxu0 0.0
    %965 = vmatpush1.msra.mxu0 0.0
    %966 = vmatprep.subr.mxu0 0.0
    %967 = vmatpush1.msra.mxu0 0.0
    %968 = vmatprep.subr.mxu0 0.0
    %969 = vmatpush1.msra.mxu0 0.0
    %970 = vmatprep.subr.mxu0 0.0
    %971 = vmatpush1.msra.mxu0 0.0
    %972 = vmatprep.subr.mxu0 0.0
    %973 = vmatpush1.msra.mxu0 0.0
    %974 = vmatprep.subr.mxu0 0.0
    %975 = vmatpush1.msra.mxu0 0.0
    %976 = vmatprep.subr.mxu0 0.0
    %977 = vmatpush1.msra.mxu0 0.0
    %978 = vmatprep.subr.mxu0 0.0
    %979 = vmatpush1.msra.mxu0 0.0
    %980 = vmatprep.subr.mxu0 0.0
    %981 = vmatpush1.msra.mxu0 0.0
    %982 = vmatprep.subr.mxu0 0.0
    %983 = vmatpush1.msra.mxu0 0.0
    %984 = vmatprep.subr.mxu0 0.0
    %985 = vmatpush1.msra.mxu0 0.0
    %986 = vmatprep.subr.mxu0 0.0
    %987 = vmatpush1.msra.mxu0 0.0
    %988 = vmatprep.subr.mxu0 0.0
    %989 = vmatpush1.msra.mxu0 0.0
    %990 = vmatprep.subr.mxu0 0.0
    %991 = vmatpush1.msra.mxu0 0.0
    %992 = vmatprep.subr.mxu0 0.0
    %993 = vmatpush1.msra.mxu0 0.0
    %994 = vmatprep.mubr.f32.mxu0 0.0
    %995 = vmatmul.mubr.f32.gmra.mrb[0].mxu0 %v928
    %v996 = vpop.f32.mrb[0].mxu0
    %v997 = vadd.f32 0.0, %v996
    %v998 = vpop.f32.mrb[0].mxu0
    %v999 = vadd.f32 0.0, %v998
    %1000 = vdwg.mxu0
    %v1001 = vadd.f32 %v215, %v997
    %v1002 = vadd.f32 %v217, %v999
    %v1003 = vxor.u32 %v1001, 2147483648
    %v1004 = vxor.u32 %v1002, 2147483648
    %v1005 = vmul.f32 %v1003, 1.442695
    %v1006 = vpow.pop %v1005
    %v1007 = vmul.f32 %v1004, 1.442695
    %v1008 = vpow.pop %v1007
    %v1009 = vadd.f32 %v1006, 1.0
    %v1010 = vadd.f32 %v1008, 1.0
    %v1011 = vrcp.pop %v1009
    %v1012 = vmul.f32 1.0, %v1011
    %v1013 = vrcp.pop %v1010
    %v1014 = vmul.f32 1.0, %v1013
    %v1015 = vmul.f32 %v1014, 2.0
    %v1016 = vsub.f32 %v1015, 1.0
    %v1017 = vmul.f32 %v1012, %v922
    %v1018 = vmul.f32 %v1012, %v1016
    %1020 = vrot.lane.b32.xlu0 %v1018, 64
    %v1021 = vpop.permute.xlu0 %1020
    %v1023 = vadd.f32 %v1017, %v1021
    %v1024 = vtanh.pop %v1023
    %v1025 = vmul.f32 %v1014, %v1024
    %v1026 = vld [vmem:[%s4] sm:$0xff]
    %v1027 = vld [vmem:[%s4 + $0x8] sm:$0xff]
    %v1028 = vld [vmem:[%s4 + $0x10] sm:$0xff]
    %v1029 = vld [vmem:[%s4 + $0x18] sm:$0xff]
    %v1030 = vld [vmem:[%s4 + $0x20] sm:$0xff]
    %v1031 = vld [vmem:[%s4 + $0x28] sm:$0xff]
    %v1032 = vld [vmem:[%s4 + $0x30] sm:$0xff]
    %v1033 = vld [vmem:[%s4 + $0x38] sm:$0xff]
    %v1034 = vld [vmem:[%s5] sm:$0x1]
    %v1036 = vlaneseq
    %v1037 = vshrl.u32 %v1036, 7
    %v1038 = vsub.s32 0, %v1037
    %v1039 = vrot.slane %v1034, %v1038
    %1042 = vrot.lane.b32.xlu0 %v1025, 64
    %v1043 = vpop.permute.xlu0 %1042
    %v1044 = vsel %vm219, %v1043, 0
    %1046 = vmatprep.subr.mxu0 0.0
    %1047 = vmatpush1.msra.mxu0 %v1026
    %1048 = vmatprep.subr.mxu0 0.0
    %1049 = vmatpush1.msra.mxu0 %v1027
    %1050 = vmatprep.subr.mxu0 0.0
    %1051 = vmatpush1.msra.mxu0 %v1028
    %1052 = vmatprep.subr.mxu0 0.0
    %1053 = vmatpush1.msra.mxu0 %v1029
    %1054 = vmatprep.subr.mxu0 0.0
    %1055 = vmatpush1.msra.mxu0 %v1030
    %1056 = vmatprep.subr.mxu0 0.0
    %1057 = vmatpush1.msra.mxu0 %v1031
    %1058 = vmatprep.subr.mxu0 0.0
    %1059 = vmatpush1.msra.mxu0 %v1032
    %1060 = vmatprep.subr.mxu0 0.0
    %1061 = vmatpush1.msra.mxu0 %v1033
    %1062 = vmatprep.subr.mxu0 0.0
    %1063 = vmatpush1.msra.mxu0 0.0
    %1064 = vmatprep.subr.mxu0 0.0
    %1065 = vmatpush1.msra.mxu0 0.0
    %1066 = vmatprep.subr.mxu0 0.0
    %1067 = vmatpush1.msra.mxu0 0.0
    %1068 = vmatprep.subr.mxu0 0.0
    %1069 = vmatpush1.msra.mxu0 0.0
    %1070 = vmatprep.subr.mxu0 0.0
    %1071 = vmatpush1.msra.mxu0 0.0
    %1072 = vmatprep.subr.mxu0 0.0
    %1073 = vmatpush1.msra.mxu0 0.0
    %1074 = vmatprep.subr.mxu0 0.0
    %1075 = vmatpush1.msra.mxu0 0.0
    %1076 = vmatprep.subr.mxu0 0.0
    %1077 = vmatpush1.msra.mxu0 0.0
    %1078 = vmatprep.subr.mxu0 0.0
    %1079 = vmatpush1.msra.mxu0 0.0
    %1080 = vmatprep.subr.mxu0 0.0
    %1081 = vmatpush1.msra.mxu0 0.0
    %1082 = vmatprep.subr.mxu0 0.0
    %1083 = vmatpush1.msra.mxu0 0.0
    %1084 = vmatprep.subr.mxu0 0.0
    %1085 = vmatpush1.msra.mxu0 0.0
    %1086 = vmatprep.subr.mxu0 0.0
    %1087 = vmatpush1.msra.mxu0 0.0
    %1088 = vmatprep.subr.mxu0 0.0
    %1089 = vmatpush1.msra.mxu0 0.0
    %1090 = vmatprep.subr.mxu0 0.0
    %1091 = vmatpush1.msra.mxu0 0.0
    %1092 = vmatprep.subr.mxu0 0.0
    %1093 = vmatpush1.msra.mxu0 0.0
    %1094 = vmatprep.subr.mxu0 0.0
    %1095 = vmatpush1.msra.mxu0 0.0
    %1096 = vmatprep.subr.mxu0 0.0
    %1097 = vmatpush1.msra.mxu0 0.0
    %1098 = vmatprep.subr.mxu0 0.0
    %1099 = vmatpush1.msra.mxu0 0.0
    %1100 = vmatprep.subr.mxu0 0.0
    %1101 = vmatpush1.msra.mxu0 0.0
    %1102 = vmatprep.subr.mxu0 0.0
    %1103 = vmatpush1.msra.mxu0 0.0
    %1104 = vmatprep.subr.mxu0 0.0
    %1105 = vmatpush1.msra.mxu0 0.0
    %1106 = vmatprep.subr.mxu0 0.0
    %1107 = vmatpush1.msra.mxu0 0.0
    %1108 = vmatprep.subr.mxu0 0.0
    %1109 = vmatpush1.msra.mxu0 0.0
    %1110 = vmatprep.mubr.f32.mxu0 0.0
    %1111 = vmatmul.mubr.f32.gmra.mrb[0].mxu0 %v1044
    %v1112 = vpop.f32.mrb[0].mxu0
    %v1113 = vadd.f32 %v1039, %v1112
    %v1114 = vpop.f32.mrb[0].mxu0
    %1115 = vdwg.mxu0
    %vm1116 = vcmask 64512
    %1117 = vst.msk [vmem:[%s6] sm:$0xff] %vm1116, %v1113
    // Predicated region
    $region30: #{lstm_module_forward.1} parent=1 // pred_check
      _
    $region31: #{lstm_module_forward.1} parent=1 // pred_check_branch
      %1119 = sbr.rel (0) target = $region33
    $region32: #{lstm_module_forward.1} parent=1 // pred_region
      _
    $region33: #{lstm_module_forward.1} parent=1 // pred_fallthru
      _
    // Predicated region
    $region34: #{lstm_module_forward.1} parent=1 // pred_check
      _
    $region35: #{lstm_module_forward.1} parent=1 // pred_check_branch
      %1121 = sbr.rel (0) target = $region37
    $region36: #{lstm_module_forward.1} parent=1 // pred_region
      _
    $region37: #{lstm_module_forward.1} parent=1 // pred_fallthru
      _
    %1122 = vsyncpa [#allocation3], 1

</llo_original>
